<compile_context>
chip_gen: v6e
topology: v6e:2x2x1
jax: 0.10.0
libtpu: 0.0.40
codegen_flags: <defaults>
</compile_context>

<pallas_src>
import jax
import jax.numpy as jnp
from jax.experimental import pallas as pl
from jax.experimental.pallas import tpu as pltpu


# ---------------------------------------------------------------------------
# Primary path: lane-dense pipelined copy (HW % 128 == 0)
# ---------------------------------------------------------------------------
def _split_copy_kernel(x0_ref, x1_ref, x2_ref, s0_ref, s1_ref, s2_ref):
    # Each ref is a (B_blk, row_blk, 128) VMEM block; channel dim was squeezed
    # by the BlockSpec, so every store is a full-tile, unmasked vst.
    s0_ref[...] = x0_ref[...]
    s1_ref[...] = x1_ref[...]
    s2_ref[...] = x2_ref[...]


def _split_pipelined(x, N, H, W):
    HW = H * W
    L = 128
    R = HW // L
    itemsize = jnp.dtype(x.dtype).itemsize
    sub = max(8, 32 // itemsize)  # sublane tile: 8 (f32), 16 (bf16), 32 (i8/fp8)

    # Row block: full extent when small (always legal), otherwise a fixed
    # sub-multiple <= 1024; pl.cdiv grids handle ragged tails, so no divisor
    # search and no risk of a full-R block blowing scoped VMEM.
    row_cap = 1024
    row_blk = R if R <= row_cap else row_cap - (row_cap % sub)

    # Batch block: amortize per-grid-step overhead by moving ~2 MiB of input
    # per step (this kernel is pure HBM bandwidth; block size is the lever).
    per_batch_bytes = 3 * row_blk * L * itemsize
    target_bytes = 2 * 1024 * 1024
    B_blk = max(1, min(N, target_bytes // per_batch_bytes))

    grid_b = pl.cdiv(N, B_blk)
    grid_r = pl.cdiv(R, row_blk)
    # v7x megacore: keep >= 2 "parallel" steps, but only when each half still
    # moves enough bytes (>= 512 KiB) to be worth the per-step overhead.
    if grid_b * grid_r < 2 and N >= 2 and pl.cdiv(N, 2) * per_batch_bytes >= 512 * 1024:
        B_blk = pl.cdiv(N, 2)
        grid_b = pl.cdiv(N, B_blk)

    x4 = x.reshape(N, 3, R, L)  # free, row-major metadata reshape

    # One input spec per channel; the channel dim (size 1) is squeezed out of
    # the kernel ref via `None` in block_shape.
    in_specs = [
        pl.BlockSpec((B_blk, None, row_blk, L), lambda b, r, k=k: (b, k, r, 0))
        for k in range(3)
    ]
    split_spec = pl.BlockSpec((B_blk, row_blk, L), lambda b, r: (b, r, 0))
    out_shape = tuple(jax.ShapeDtypeStruct((N, R, L), x.dtype) for _ in range(3))

    s0, s1, s2 = pl.pallas_call(
        _split_copy_kernel,
        out_shape=out_shape,
        grid=(grid_b, grid_r),
        in_specs=in_specs,
        out_specs=(split_spec, split_spec, split_spec),
        compiler_params=pltpu.CompilerParams(
            dimension_semantics=("parallel", "parallel")),
    )(x4, x4, x4)

    return tuple(s.reshape(N, 1, H, W) for s in (s0, s1, s2))


# ---------------------------------------------------------------------------
# Fallback path: strided HBM->HBM DMA (HW % 128 != 0)
# ---------------------------------------------------------------------------
def _split_dma_kernel(x_hbm, s0_hbm, s1_hbm, s2_hbm, sem):
    # Pure copy: no reason to round-trip through VMEM / vregs.
    copies = [
        pltpu.make_async_copy(x_hbm.at[:, k:k + 1], dst, sem.at[k])
        for k, dst in enumerate((s0_hbm, s1_hbm, s2_hbm))
    ]
    for cp in copies:
        cp.start()
    for cp in copies:
        cp.wait()


def _split_manual_dma(x, N, H, W):
    out_shape = tuple(jax.ShapeDtypeStruct((N, 1, H, W), x.dtype) for _ in range(3))
    s0, s1, s2 = pl.pallas_call(
        _split_dma_kernel,
        out_shape=out_shape,
        in_specs=[pl.BlockSpec(memory_space=pl.ANY)],
        out_specs=tuple(pl.BlockSpec(memory_space=pl.ANY) for _ in range(3)),
        scratch_shapes=[pltpu.SemaphoreType.DMA((3,))],
        compiler_params=pltpu.CompilerParams(has_side_effects=True),
    )(x)
    return (s0, s1, s2)


# ---------------------------------------------------------------------------
# Forward
# ---------------------------------------------------------------------------
def split_cat_forward(x):
    """Mirrors Model.forward: returns (concatenated, (split0, split1, split2))."""
    N, C, H, W = x.shape
    assert C == 3, "forward expects split sizes [1, 1, 1] along dim=1 (C == 3)"
    HW = H * W

    # cat(split(x, [1,1,1], 1), 1) == x exactly; JAX arrays are immutable, so
    # returning the input array is the optimal (zero-traffic) implementation.
    cat = x

    if HW % 128 == 0:
        splits = _split_pipelined(x, N, H, W)
    else:
        splits = _split_manual_dma(x, N, H, W)

    return cat, splits


if __name__ == "__main__":
    key = jax.random.PRNGKey(0)
    # NCHW input consistent with split([1,1,1], dim=1): (batch=2, C=3, H=16, W=16)
    x = jax.random.normal(key, (2, 3, 16, 16), dtype=jnp.float32)

    cat, splits = split_cat_forward(x)
    jax.block_until_ready((cat, splits))

    # correctness check against plain JAX reference
    ref_splits = (x[:, 0:1], x[:, 1:2], x[:, 2:3])
    ref_cat = jnp.concatenate(ref_splits, axis=1)
    assert cat.shape == ref_cat.shape and bool(jnp.array_equal(cat, ref_cat))
    for got, want in zip(splits, ref_splits):
        assert got.shape == want.shape and bool(jnp.array_equal(got, want))

    print("KERNEL_OK")
</pallas_src>

<mosaic_0001>
module attributes {stable_mosaic.version = 11 : i64} {
  func.func @_split_copy_kernel(%arg0: i32, %arg1: i32, %arg2: memref<2x1x2x128xf32, #tpu.memory_space<vmem>>, %arg3: memref<2x1x2x128xf32, #tpu.memory_space<vmem>>, %arg4: memref<2x1x2x128xf32, #tpu.memory_space<vmem>>, %arg5: memref<2x2x128xf32, #tpu.memory_space<vmem>>, %arg6: memref<2x2x128xf32, #tpu.memory_space<vmem>>, %arg7: memref<2x2x128xf32, #tpu.memory_space<vmem>>) attributes {dimension_semantics = [#tpu.dimension_semantics<parallel>, #tpu.dimension_semantics<parallel>], iteration_bounds = array<i64: 1, 1>, scalar_prefetch = 0 : i64, scratch_operands = 0 : i64, tpu.core_type = #tpu.core_type<tc>, window_params = [{transform_indices = @transform_0, window_bounds = array<i64: 2, 1, 2, 128>}, {transform_indices = @transform_1, window_bounds = array<i64: 2, 1, 2, 128>}, {transform_indices = @transform_2, window_bounds = array<i64: 2, 1, 2, 128>}, {transform_indices = @transform_3, window_bounds = array<i64: 2, 2, 128>}, {transform_indices = @transform_4, window_bounds = array<i64: 2, 2, 128>}, {transform_indices = @transform_5, window_bounds = array<i64: 2, 2, 128>}]} {
    %c0 = arith.constant 0 : index
    %c0_0 = arith.constant 0 : index
    %c0_1 = arith.constant 0 : index
    %c0_2 = arith.constant 0 : index
    %0 = vector.load %arg2[%c0, %c0_0, %c0_1, %c0_2] : memref<2x1x2x128xf32, #tpu.memory_space<vmem>>, vector<2x1x2x128xf32>
    %1 = vector.shape_cast %0 : vector<2x1x2x128xf32> to vector<2x2x128xf32>
    %c0_3 = arith.constant 0 : index
    %c0_4 = arith.constant 0 : index
    %c0_5 = arith.constant 0 : index
    %2 = vector.load %arg5[%c0_3, %c0_4, %c0_5] : memref<2x2x128xf32, #tpu.memory_space<vmem>>, vector<2x2x128xf32>
    tpu.vector_store %arg5[%c0_3, %c0_4, %c0_5], %1 {strides = array<i32>} : memref<2x2x128xf32, #tpu.memory_space<vmem>>, vector<2x2x128xf32>,
    %c0_6 = arith.constant 0 : index
    %c0_7 = arith.constant 0 : index
    %c0_8 = arith.constant 0 : index
    %c0_9 = arith.constant 0 : index
    %3 = vector.load %arg3[%c0_6, %c0_7, %c0_8, %c0_9] : memref<2x1x2x128xf32, #tpu.memory_space<vmem>>, vector<2x1x2x128xf32>
    %4 = vector.shape_cast %3 : vector<2x1x2x128xf32> to vector<2x2x128xf32>
    %c0_10 = arith.constant 0 : index
    %c0_11 = arith.constant 0 : index
    %c0_12 = arith.constant 0 : index
    %5 = vector.load %arg6[%c0_10, %c0_11, %c0_12] : memref<2x2x128xf32, #tpu.memory_space<vmem>>, vector<2x2x128xf32>
    tpu.vector_store %arg6[%c0_10, %c0_11, %c0_12], %4 {strides = array<i32>} : memref<2x2x128xf32, #tpu.memory_space<vmem>>, vector<2x2x128xf32>,
    %c0_13 = arith.constant 0 : index
    %c0_14 = arith.constant 0 : index
    %c0_15 = arith.constant 0 : index
    %c0_16 = arith.constant 0 : index
    %6 = vector.load %arg4[%c0_13, %c0_14, %c0_15, %c0_16] : memref<2x1x2x128xf32, #tpu.memory_space<vmem>>, vector<2x1x2x128xf32>
    %7 = vector.shape_cast %6 : vector<2x1x2x128xf32> to vector<2x2x128xf32>
    %c0_17 = arith.constant 0 : index
    %c0_18 = arith.constant 0 : index
    %c0_19 = arith.constant 0 : index
    %8 = vector.load %arg7[%c0_17, %c0_18, %c0_19] : memref<2x2x128xf32, #tpu.memory_space<vmem>>, vector<2x2x128xf32>
    tpu.vector_store %arg7[%c0_17, %c0_18, %c0_19], %7 {strides = array<i32>} : memref<2x2x128xf32, #tpu.memory_space<vmem>>, vector<2x2x128xf32>,
    return
  }
  func.func @transform_0(%arg0: i32, %arg1: i32) -> (i32, i32, i32, i32) {
    %c0_i32 = arith.constant 0 : i32
    %c0_i32_0 = arith.constant 0 : i32
    %c0_i32_1 = arith.constant 0 : i32
    return %arg0, %c0_i32, %arg1, %c0_i32_0 : i32, i32, i32, i32
  }
  func.func @transform_1(%arg0: i32, %arg1: i32) -> (i32, i32, i32, i32) {
    %c1_i32 = arith.constant 1 : i32
    %c0_i32 = arith.constant 0 : i32
    %c0_i32_0 = arith.constant 0 : i32
    return %arg0, %c1_i32, %arg1, %c0_i32 : i32, i32, i32, i32
  }
  func.func @transform_2(%arg0: i32, %arg1: i32) -> (i32, i32, i32, i32) {
    %c2_i32 = arith.constant 2 : i32
    %c0_i32 = arith.constant 0 : i32
    %c0_i32_0 = arith.constant 0 : i32
    return %arg0, %c2_i32, %arg1, %c0_i32 : i32, i32, i32, i32
  }
  func.func @transform_3(%arg0: i32, %arg1: i32) -> (i32, i32, i32) {
    %c0_i32 = arith.constant 0 : i32
    %c0_i32_0 = arith.constant 0 : i32
    return %arg0, %arg1, %c0_i32 : i32, i32, i32
  }
  func.func @transform_4(%arg0: i32, %arg1: i32) -> (i32, i32, i32) {
    %c0_i32 = arith.constant 0 : i32
    %c0_i32_0 = arith.constant 0 : i32
    return %arg0, %arg1, %c0_i32 : i32, i32, i32
  }
  func.func @transform_5(%arg0: i32, %arg1: i32) -> (i32, i32, i32) {
    %c0_i32 = arith.constant 0 : i32
    %c0_i32_0 = arith.constant 0 : i32
    return %arg0, %arg1, %c0_i32 : i32, i32, i32
  }
}

</mosaic_0001>

<llo_original>
// kernel: tpu_custom_call.1
$region0: #{tpu_custom_call.1}
  #allocation0 [shape = 'u32[]', space=smem, size = 0x4, offset = 0x4, fixed_abs, tag = 'smem constant byte address 0x4 - core index']
  #allocation1 [shape = 'u32[144,128]{1,0:T(1,128)}', space=vmem, size = 0x12000, scoped, tag = 'internal scratch']
  %s0 = inlined_call_operand.hbm [shape: f32[2,3,2,128], index: 0, kind: input, shape index: {}]
  %s1 = inlined_call_operand.hbm [shape: f32[2,3,2,128], index: 1, kind: input, shape index: {}]
  %s2 = inlined_call_operand.hbm [shape: f32[2,3,2,128], index: 2, kind: input, shape index: {}]
  %s3 = inlined_call_operand.hbm [shape: f32[2,2,128], index: 3, kind: output, shape index: {0}]
  %s4 = inlined_call_operand.hbm [shape: f32[2,2,128], index: 4, kind: output, shape index: {1}]
  %s5 = inlined_call_operand.hbm [shape: f32[2,2,128], index: 5, kind: output, shape index: {2}]
  %6 = xla_tuple %s3, %s4, %s5
  %s7 = sld [smem:[#allocation0]]
  $region50: #{tpu_custom_call.1} parent=0
    _
  %s9 = ssub.s32 1, %s7
  %s10 = scalar_select 0, %s9, %s7
  $region1: #{tpu_custom_call.1} parent=0
    #allocation2 [shape = 'u8[2048]{0}', space=vmem, size = 0x800, scoped, tag = 'input window, operand 0, single buffered']
    #allocation3 [shape = 's32[1]{0}', space=sflag, size = 0x4, scoped, tag = 'scoped memory for tpu_custom_call.1']
    #allocation4 [shape = 's32[1]{0}', space=sflag, size = 0x4, scoped, tag = 'scoped memory for tpu_custom_call.1']
    #allocation5 [shape = 'u8[2048]{0}', space=vmem, size = 0x800, scoped, tag = 'input window, operand 1, single buffered']
    #allocation6 [shape = 's32[1]{0}', space=sflag, size = 0x4, scoped, tag = 'scoped memory for tpu_custom_call.1']
    #allocation7 [shape = 'u8[2048]{0}', space=vmem, size = 0x800, scoped, tag = 'input window, operand 2, single buffered']
    #allocation8 [shape = 'u8[2048]{0}', space=vmem, size = 0x800, scoped, tag = 'output window, operand 0, single buffered']
    #allocation9 [shape = 'u8[2048]{0}', space=vmem, size = 0x800, scoped, tag = 'output window, operand 1, single buffered']
    #allocation10 [shape = 's32[1]{0}', space=sflag, size = 0x4, scoped, tag = 'scoped memory for tpu_custom_call.1']
    #allocation11 [shape = 'u8[2048]{0}', space=vmem, size = 0x800, scoped, tag = 'output window, operand 2, single buffered']
    %11 = vsyncpa [#allocation3], 0
    %12 = vsyncpa [#allocation6], 0
    %13 = vsyncpa [#allocation4], 0
    %14 = vsyncpa [#allocation10], 0
    // Predicated region
    $region2: #{tpu_custom_call.1} parent=1 // pred_check
      _
    $region3: #{tpu_custom_call.1} parent=1 // pred_check_branch
      %16 = sbr.rel (0) target = $region5
    $region4: #{tpu_custom_call.1} parent=1 // pred_region
      %s18 = ssub.s32 64, 64
      %19 = vsyncadd [#allocation3], %s18
      %s20 = sshll.u32 [#allocation2], 4
      %s21 = int_to_ptr.vmem [resolvable:$true] %s20
      %26 = dma.hbm_to_vmem [thread:$0]  %s0, 64, %s21, [#allocation3], 96, 32, 2
    $region5: #{tpu_custom_call.1} parent=1 // pred_fallthru
      _
    // Predicated region
    $region6: #{tpu_custom_call.1} parent=1 // pred_check
      _
    $region7: #{tpu_custom_call.1} parent=1 // pred_check_branch
      %28 = sbr.rel (0) target = $region9
    $region8: #{tpu_custom_call.1} parent=1 // pred_region
      %s30 = ssub.s32 64, 64
      %31 = vsyncadd [#allocation6], %s30
      %s32 = scalar_lea.hbm %s1, 32
      %s33 = sshll.u32 [#allocation5], 4
      %s34 = int_to_ptr.vmem [resolvable:$true] %s33
      %39 = dma.hbm_to_vmem [thread:$0]  %s32, 64, %s34, [#allocation6], 96, 32, 2
    $region9: #{tpu_custom_call.1} parent=1 // pred_fallthru
      _
    // Predicated region
    $region10: #{tpu_custom_call.1} parent=1 // pred_check
      _
    $region11: #{tpu_custom_call.1} parent=1 // pred_check_branch
      %41 = sbr.rel (0) target = $region13
    $region12: #{tpu_custom_call.1} parent=1 // pred_region
      %s43 = ssub.s32 64, 64
      %44 = vsyncadd [#allocation6], %s43
      %s45 = scalar_lea.hbm %s2, 64
      %s46 = sshll.u32 [#allocation7], 4
      %s47 = int_to_ptr.vmem [resolvable:$true] %s46
      %52 = dma.hbm_to_vmem [thread:$0]  %s45, 64, %s47, [#allocation6], 96, 32, 2
    $region13: #{tpu_custom_call.1} parent=1 // pred_fallthru
      _
    // Predicated region
    $region14: #{tpu_custom_call.1} parent=1 // pred_check
      _
    $region15: #{tpu_custom_call.1} parent=1 // pred_check_branch
      %54 = sbr.rel (0) target = $region17
    $region16: #{tpu_custom_call.1} parent=1 // pred_region
      %55 = dma.done [#allocation3], 64
    $region17: #{tpu_custom_call.1} parent=1 // pred_fallthru
      _
    // Predicated region
    $region18: #{tpu_custom_call.1} parent=1 // pred_check
      _
    $region19: #{tpu_custom_call.1} parent=1 // pred_check_branch
      %57 = sbr.rel (0) target = $region21
    $region20: #{tpu_custom_call.1} parent=1 // pred_region
      %58 = dma.done [#allocation6], 64
    $region21: #{tpu_custom_call.1} parent=1 // pred_fallthru
      _
    // Predicated region
    $region22: #{tpu_custom_call.1} parent=1 // pred_check
      _
    $region23: #{tpu_custom_call.1} parent=1 // pred_check_branch
      %60 = sbr.rel (0) target = $region25
    $region24: #{tpu_custom_call.1} parent=1 // pred_region
      %61 = dma.done [#allocation6], 64
    $region25: #{tpu_custom_call.1} parent=1 // pred_fallthru
      _
    %v62 = vld [vmem:[#allocation2] sm:$0x3]
    %v63 = vld [vmem:[#allocation2 + $0x2] sm:$0x3]
    %64 = vst [vmem:[#allocation8] sm:$0x3] %v62
    %65 = vst [vmem:[#allocation8 + $0x2] sm:$0x3] %v63
    %v66 = vld [vmem:[#allocation5] sm:$0x3]
    %v67 = vld [vmem:[#allocation5 + $0x2] sm:$0x3]
    %68 = vst [vmem:[#allocation9] sm:$0x3] %v66
    %69 = vst [vmem:[#allocation9 + $0x2] sm:$0x3] %v67
    %v70 = vld [vmem:[#allocation7] sm:$0x3]
    %v71 = vld [vmem:[#allocation7 + $0x2] sm:$0x3]
    %72 = vst [vmem:[#allocation11] sm:$0x3] %v70
    %73 = vst [vmem:[#allocation11 + $0x2] sm:$0x3] %v71
    // Predicated region
    $region26: #{tpu_custom_call.1} parent=1 // pred_check
      _
    $region27: #{tpu_custom_call.1} parent=1 // pred_check_branch
      %75 = sbr.rel (0) target = $region29
    $region28: #{tpu_custom_call.1} parent=1 // pred_region
      %s77 = ssub.s32 64, 64
      %78 = vsyncadd [#allocation4], %s77
      %s79 = sshll.u32 [#allocation8], 4
      %s80 = int_to_ptr.vmem [resolvable:$true] %s79
      %85 = dma.vmem_to_hbm [thread:$0]  %s80, 64, %s3, [#allocation4], 32, 32, 2
    $region29: #{tpu_custom_call.1} parent=1 // pred_fallthru
      _
    // Predicated region
    $region30: #{tpu_custom_call.1} parent=1 // pred_check
      _
    $region31: #{tpu_custom_call.1} parent=1 // pred_check_branch
      %87 = sbr.rel (0) target = $region33
    $region32: #{tpu_custom_call.1} parent=1 // pred_region
      %s89 = ssub.s32 64, 64
      %90 = vsyncadd [#allocation10], %s89
      %s91 = sshll.u32 [#allocation9], 4
      %s92 = int_to_ptr.vmem [resolvable:$true] %s91
      %97 = dma.vmem_to_hbm [thread:$0]  %s92, 64, %s4, [#allocation10], 32, 32, 2
    $region33: #{tpu_custom_call.1} parent=1 // pred_fallthru
      _
    // Predicated region
    $region34: #{tpu_custom_call.1} parent=1 // pred_check
      _
    $region35: #{tpu_custom_call.1} parent=1 // pred_check_branch
      %99 = sbr.rel (0) target = $region37
    $region36: #{tpu_custom_call.1} parent=1 // pred_region
      %s101 = ssub.s32 64, 64
      %102 = vsyncadd [#allocation10], %s101
      %s103 = sshll.u32 [#allocation11], 4
      %s104 = int_to_ptr.vmem [resolvable:$true] %s103
      %109 = dma.vmem_to_hbm [thread:$0]  %s104, 64, %s5, [#allocation10], 32, 32, 2
    $region37: #{tpu_custom_call.1} parent=1 // pred_fallthru
      _
    // Predicated region
    $region38: #{tpu_custom_call.1} parent=1 // pred_check
      _
    $region39: #{tpu_custom_call.1} parent=1 // pred_check_branch
      %111 = sbr.rel (0) target = $region41
    $region40: #{tpu_custom_call.1} parent=1 // pred_region
      %112 = dma.done [#allocation4], 64
    $region41: #{tpu_custom_call.1} parent=1 // pred_fallthru
      _
    // Predicated region
    $region42: #{tpu_custom_call.1} parent=1 // pred_check
      _
    $region43: #{tpu_custom_call.1} parent=1 // pred_check_branch
      %114 = sbr.rel (0) target = $region45
    $region44: #{tpu_custom_call.1} parent=1 // pred_region
      %115 = dma.done [#allocation10], 64
    $region45: #{tpu_custom_call.1} parent=1 // pred_fallthru
      _
    // Predicated region
    $region46: #{tpu_custom_call.1} parent=1 // pred_check
      _
    $region47: #{tpu_custom_call.1} parent=1 // pred_check_branch
      %117 = sbr.rel (0) target = $region49
    $region48: #{tpu_custom_call.1} parent=1 // pred_region
      %118 = dma.done [#allocation10], 64
    $region49: #{tpu_custom_call.1} parent=1 // pred_fallthru
      _
    %119 = vsyncpa [#allocation3], 1
    %120 = vsyncpa [#allocation6], 1
    %121 = vsyncpa [#allocation4], 1
    %122 = vsyncpa [#allocation10], 1

</llo_original>
